<compile_context>
chip_gen: v7x
topology: tpu7x:2x2x1
jax: 0.10.0
libtpu: 0.0.40
codegen_flags: <defaults>
</compile_context>

<pallas_src>
import jax
import jax.numpy as jnp
from jax.experimental import pallas as pl
from jax.experimental.pallas import tpu as pltpu


def _leaky_relu(x, slope=0.01):
    return jnp.where(x >= 0.0, x, slope * x)


def _softplus(x, beta=1.0, threshold=20.0):
    # matches torch.nn.Softplus default: linear above threshold (numerically stable)
    z = beta * x
    safe = jnp.minimum(z, threshold)
    return jnp.where(z > threshold, x, jnp.log1p(jnp.exp(safe)) / beta)


def _mlp_kernel(x_ref,
                w1_ref, b1_ref,
                w2_ref, b2_ref,
                w3_ref, b3_ref,
                w4_ref, b4_ref,
                o_ref):
    # x_ref: (D, T) batch-on-lanes.  w*: (out, in).  b*: (out, 1).  o_ref: (1, T).
    x = x_ref[...].astype(jnp.float32)   # keep f32 math (v5e has no bf16 VPU)

    h = jnp.dot(w1_ref[...], x, preferred_element_type=jnp.float32) + b1_ref[...]
    h = _leaky_relu(h)

    h = jnp.dot(w2_ref[...], h, preferred_element_type=jnp.float32) + b2_ref[...]
    h = _leaky_relu(h)

    h = jnp.dot(w3_ref[...], h, preferred_element_type=jnp.float32) + b3_ref[...]
    h = _leaky_relu(h)

    z = jnp.dot(w4_ref[...], h, preferred_element_type=jnp.float32) + b4_ref[...]
    o_ref[...] = _softplus(z).astype(o_ref.dtype)


def _round_up(v, m):
    return (v + m - 1) // m * m


def distance_regr_net(x, params, *, batch_tile=8192):
    """Forward pass of DistanceRegrNet.

    x:      (N, D), float32 or bfloat16 (bf16 halves HBM traffic; math stays f32 in-kernel).
    params: list of 4 (W, b) pairs in PyTorch-native layout: W is (out, in), b is (out,).
    Returns (N, 1) float32, matching the PyTorch module.
    """
    N, D = x.shape
    assert len(params) == 4

    # Lane-dense batch tile (multiple of 128); keep >= 2 grid steps when possible so both
    # v7x TensorCores get work ("parallel" grid axis shards across cores).
    tile = _round_up(min(batch_tile, _round_up(N, 128)), 128)
    n_pad = _round_up(N, tile)
    if n_pad == tile and tile >= 256:
        tile = _round_up(tile // 2, 128)
        n_pad = _round_up(N, tile)
    grid = n_pad // tile

    # Feature-major, batch-on-lanes.  (Ideally the producer emits this layout directly; the
    # transpose/pad here is a one-off XLA op outside the kernel.)
    xt = x.T  # (D, N)
    if n_pad != N:
        xt = jnp.pad(xt, ((0, 0), (0, n_pad - N)))

    ws, bs = [], []
    for w, b in params:
        ws.append(jnp.asarray(w))                      # (out, in)
        bs.append(jnp.asarray(b).reshape(-1, 1))       # (out, 1) — broadcasts over lanes

    full = lambda arr: pl.BlockSpec(arr.shape, lambda i: (0, 0))

    out = pl.pallas_call(
        _mlp_kernel,
        out_shape=jax.ShapeDtypeStruct((1, n_pad), jnp.float32),
        grid_spec=pltpu.PrefetchScalarGridSpec(
            num_scalar_prefetch=0,
            grid=(grid,),
            in_specs=[
                pl.BlockSpec((D, tile), lambda i: (0, i)),   # streamed, lane-dense
                full(ws[0]), full(bs[0]),                    # weights/biases fetched once
                full(ws[1]), full(bs[1]),
                full(ws[2]), full(bs[2]),
                full(ws[3]), full(bs[3]),
            ],
            out_specs=pl.BlockSpec((1, tile), lambda i: (0, i)),   # lane-dense output slab
        ),
        compiler_params=pltpu.CompilerParams(
            dimension_semantics=("parallel",)),
    )(xt, ws[0], bs[0], ws[1], bs[1], ws[2], bs[2], ws[3], bs[3])

    return out[:, :N].T   # (N, 1), matching the PyTorch module output


def init_params(key, arch):
    """Deterministic init mimicking nn.Linear default (uniform +-1/sqrt(fan_in)).
    Weights stored PyTorch-native as (out, in), biases as (out,)."""
    params = []
    for i in range(len(arch) - 1):
        fan_in, fan_out = arch[i], arch[i + 1]
        key, kw, kb = jax.random.split(key, 3)
        bound = 1.0 / jnp.sqrt(fan_in)
        w = jax.random.uniform(kw, (fan_out, fan_in), jnp.float32, -bound, bound)
        b = jax.random.uniform(kb, (fan_out,), jnp.float32, -bound, bound)
        params.append((w, b))
    return params


def reference_forward(x, params):
    """Pure-JAX reference of the PyTorch forward (row-major, f32 math)."""
    h = x.astype(jnp.float32)
    n_layers = len(params)
    for i, (w, b) in enumerate(params):
        h = h @ w.T + b
        if i < n_layers - 1:
            h = _leaky_relu(h)
    return _softplus(h)


if __name__ == "__main__":
    input_dim = 8
    batch = 300   # deliberately not a multiple of 128: exercises padding + a 2-step grid
    arch = [input_dim, 6, 4, 2, 1]

    key = jax.random.PRNGKey(0)
    kx, kp = jax.random.split(key)
    x = jax.random.normal(kx, (batch, input_dim), jnp.float32)
    params = init_params(kp, arch)

    # f32 input path
    out = jax.block_until_ready(distance_regr_net(x, params))
    ref = reference_forward(x, params)
    assert out.shape == (batch, 1)
    assert jnp.allclose(out, ref, atol=1e-5, rtol=1e-5), "f32 mismatch vs reference"

    # bf16 input path (halves HBM bytes; in-kernel math stays f32)
    x_bf16 = x.astype(jnp.bfloat16)
    out_bf = jax.block_until_ready(distance_regr_net(x_bf16, params))
    ref_bf = reference_forward(x_bf16, params)
    assert out_bf.shape == (batch, 1)
    assert jnp.allclose(out_bf, ref_bf, atol=1e-5, rtol=1e-5), "bf16 mismatch vs reference"

    print("KERNEL_OK")
</pallas_src>

<mosaic_0001>
module attributes {stable_mosaic.version = 11 : i64} {
  func.func @_mlp_kernel(%arg0: i32, %arg1: memref<8x256xf32, #tpu.memory_space<vmem>>, %arg2: memref<6x8xf32, #tpu.memory_space<vmem>>, %arg3: memref<6x1xf32, #tpu.memory_space<vmem>>, %arg4: memref<4x6xf32, #tpu.memory_space<vmem>>, %arg5: memref<4x1xf32, #tpu.memory_space<vmem>>, %arg6: memref<2x4xf32, #tpu.memory_space<vmem>>, %arg7: memref<2x1xf32, #tpu.memory_space<vmem>>, %arg8: memref<1x2xf32, #tpu.memory_space<vmem>>, %arg9: memref<1x1xf32, #tpu.memory_space<vmem>>, %arg10: memref<1x256xf32, #tpu.memory_space<vmem>>) attributes {dimension_semantics = [#tpu.dimension_semantics<parallel>], iteration_bounds = array<i64: 2>, scalar_prefetch = 0 : i64, scratch_operands = 0 : i64, tpu.core_type = #tpu.core_type<tc>, window_params = [{transform_indices = @transform_0, window_bounds = array<i64: 8, 256>}, {pipeline_mode = #tpu.pipeline_mode<synchronous>, transform_indices = @transform_1, window_bounds = array<i64: 6, 8>}, {pipeline_mode = #tpu.pipeline_mode<synchronous>, transform_indices = @transform_2, window_bounds = array<i64: 6, 1>}, {pipeline_mode = #tpu.pipeline_mode<synchronous>, transform_indices = @transform_3, window_bounds = array<i64: 4, 6>}, {pipeline_mode = #tpu.pipeline_mode<synchronous>, transform_indices = @transform_4, window_bounds = array<i64: 4, 1>}, {pipeline_mode = #tpu.pipeline_mode<synchronous>, transform_indices = @transform_5, window_bounds = array<i64: 2, 4>}, {pipeline_mode = #tpu.pipeline_mode<synchronous>, transform_indices = @transform_6, window_bounds = array<i64: 2, 1>}, {pipeline_mode = #tpu.pipeline_mode<synchronous>, transform_indices = @transform_7, window_bounds = array<i64: 1, 2>}, {pipeline_mode = #tpu.pipeline_mode<synchronous>, transform_indices = @transform_8, window_bounds = array<i64: 1, 1>}, {transform_indices = @transform_9, window_bounds = array<i64: 1, 256>}]} {
    %c0 = arith.constant 0 : index
    %c0_0 = arith.constant 0 : index
    %0 = vector.load %arg1[%c0, %c0_0] : memref<8x256xf32, #tpu.memory_space<vmem>>, vector<8x256xf32>
    %c0_1 = arith.constant 0 : index
    %c0_2 = arith.constant 0 : index
    %1 = vector.load %arg2[%c0_1, %c0_2] : memref<6x8xf32, #tpu.memory_space<vmem>>, vector<6x8xf32>
    %cst = arith.constant dense<0.000000e+00> : vector<6x256xf32>
    %2 = tpu.matmul %1, %0, %cst {dimension_numbers = #tpu.dot_dimension_numbers<[1], [0], [0], [1], [0, 0, 1, 1], [], []>} : vector<6x8xf32>, vector<8x256xf32>, vector<6x256xf32> -> vector<6x256xf32>
    %c0_3 = arith.constant 0 : index
    %c0_4 = arith.constant 0 : index
    %3 = vector.load %arg3[%c0_3, %c0_4] : memref<6x1xf32, #tpu.memory_space<vmem>>, vector<6x1xf32>
    %4 = vector.broadcast %3 : vector<6x1xf32> to vector<6x256xf32>
    %5 = arith.addf %2, %4 : vector<6x256xf32>
    %cst_5 = arith.constant 0.000000e+00 : f32
    %6 = vector.broadcast %cst_5 : f32 to vector<6x256xf32>
    %7 = arith.cmpf oge, %5, %6 : vector<6x256xf32>
    %cst_6 = arith.constant 0.00999999977 : f32
    %8 = vector.broadcast %cst_6 : f32 to vector<6x256xf32>
    %9 = arith.mulf %8, %5 : vector<6x256xf32>
    %10 = arith.select %7, %5, %9 : vector<6x256xi1>, vector<6x256xf32>
    %c0_7 = arith.constant 0 : index
    %c0_8 = arith.constant 0 : index
    %11 = vector.load %arg4[%c0_7, %c0_8] : memref<4x6xf32, #tpu.memory_space<vmem>>, vector<4x6xf32>
    %cst_9 = arith.constant dense<0.000000e+00> : vector<4x256xf32>
    %12 = tpu.matmul %11, %10, %cst_9 {dimension_numbers = #tpu.dot_dimension_numbers<[1], [0], [0], [1], [0, 0, 1, 1], [], []>} : vector<4x6xf32>, vector<6x256xf32>, vector<4x256xf32> -> vector<4x256xf32>
    %c0_10 = arith.constant 0 : index
    %c0_11 = arith.constant 0 : index
    %13 = vector.load %arg5[%c0_10, %c0_11] : memref<4x1xf32, #tpu.memory_space<vmem>>, vector<4x1xf32>
    %14 = vector.broadcast %13 : vector<4x1xf32> to vector<4x256xf32>
    %15 = arith.addf %12, %14 : vector<4x256xf32>
    %cst_12 = arith.constant 0.000000e+00 : f32
    %16 = vector.broadcast %cst_12 : f32 to vector<4x256xf32>
    %17 = arith.cmpf oge, %15, %16 : vector<4x256xf32>
    %cst_13 = arith.constant 0.00999999977 : f32
    %18 = vector.broadcast %cst_13 : f32 to vector<4x256xf32>
    %19 = arith.mulf %18, %15 : vector<4x256xf32>
    %20 = arith.select %17, %15, %19 : vector<4x256xi1>, vector<4x256xf32>
    %c0_14 = arith.constant 0 : index
    %c0_15 = arith.constant 0 : index
    %21 = vector.load %arg6[%c0_14, %c0_15] : memref<2x4xf32, #tpu.memory_space<vmem>>, vector<2x4xf32>
    %cst_16 = arith.constant dense<0.000000e+00> : vector<2x256xf32>
    %22 = tpu.matmul %21, %20, %cst_16 {dimension_numbers = #tpu.dot_dimension_numbers<[1], [0], [0], [1], [0, 0, 1, 1], [], []>} : vector<2x4xf32>, vector<4x256xf32>, vector<2x256xf32> -> vector<2x256xf32>
    %c0_17 = arith.constant 0 : index
    %c0_18 = arith.constant 0 : index
    %23 = vector.load %arg7[%c0_17, %c0_18] : memref<2x1xf32, #tpu.memory_space<vmem>>, vector<2x1xf32>
    %24 = vector.broadcast %23 : vector<2x1xf32> to vector<2x256xf32>
    %25 = arith.addf %22, %24 : vector<2x256xf32>
    %cst_19 = arith.constant 0.000000e+00 : f32
    %26 = vector.broadcast %cst_19 : f32 to vector<2x256xf32>
    %27 = arith.cmpf oge, %25, %26 : vector<2x256xf32>
    %cst_20 = arith.constant 0.00999999977 : f32
    %28 = vector.broadcast %cst_20 : f32 to vector<2x256xf32>
    %29 = arith.mulf %28, %25 : vector<2x256xf32>
    %30 = arith.select %27, %25, %29 : vector<2x256xi1>, vector<2x256xf32>
    %c0_21 = arith.constant 0 : index
    %c0_22 = arith.constant 0 : index
    %31 = vector.load %arg8[%c0_21, %c0_22] : memref<1x2xf32, #tpu.memory_space<vmem>>, vector<1x2xf32>
    %cst_23 = arith.constant dense<0.000000e+00> : vector<1x256xf32>
    %32 = tpu.matmul %31, %30, %cst_23 {dimension_numbers = #tpu.dot_dimension_numbers<[1], [0], [0], [1], [0, 0, 1, 1], [], []>} : vector<1x2xf32>, vector<2x256xf32>, vector<1x256xf32> -> vector<1x256xf32>
    %c0_24 = arith.constant 0 : index
    %c0_25 = arith.constant 0 : index
    %33 = vector.load %arg9[%c0_24, %c0_25] : memref<1x1xf32, #tpu.memory_space<vmem>>, vector<1x1xf32>
    %34 = vector.broadcast %33 : vector<1x1xf32> to vector<1x256xf32>
    %35 = arith.addf %32, %34 : vector<1x256xf32>
    %cst_26 = arith.constant 1.000000e+00 : f32
    %36 = vector.broadcast %cst_26 : f32 to vector<1x256xf32>
    %37 = arith.mulf %36, %35 : vector<1x256xf32>
    %cst_27 = arith.constant 2.000000e+01 : f32
    %38 = vector.broadcast %cst_27 : f32 to vector<1x256xf32>
    %39 = arith.minimumf %37, %38 : vector<1x256xf32>
    %cst_28 = arith.constant 2.000000e+01 : f32
    %40 = vector.broadcast %cst_28 : f32 to vector<1x256xf32>
    %41 = arith.cmpf ogt, %37, %40 : vector<1x256xf32>
    %42 = math.exp %39 : vector<1x256xf32>
    %43 = math.log1p %42 : vector<1x256xf32>
    %cst_29 = arith.constant 1.000000e+00 : f32
    %44 = vector.broadcast %cst_29 : f32 to vector<1x256xf32>
    %45 = arith.divf %43, %44 : vector<1x256xf32>
    %46 = arith.select %41, %35, %45 : vector<1x256xi1>, vector<1x256xf32>
    %c0_30 = arith.constant 0 : index
    %c0_31 = arith.constant 0 : index
    %47 = vector.load %arg10[%c0_30, %c0_31] : memref<1x256xf32, #tpu.memory_space<vmem>>, vector<1x256xf32>
    tpu.vector_store %arg10[%c0_30, %c0_31], %46 {strides = array<i32>} : memref<1x256xf32, #tpu.memory_space<vmem>>, vector<1x256xf32>,
    return
  }
  func.func @transform_0(%arg0: i32) -> (i32, i32) {
    %c0_i32 = arith.constant 0 : i32
    %c0_i32_0 = arith.constant 0 : i32
    return %c0_i32, %arg0 : i32, i32
  }
  func.func @transform_1(%arg0: i32) -> (i32, i32) {
    %c0_i32 = arith.constant 0 : i32
    %c0_i32_0 = arith.constant 0 : i32
    %c0_i32_1 = arith.constant 0 : i32
    return %c0_i32, %c0_i32_0 : i32, i32
  }
  func.func @transform_2(%arg0: i32) -> (i32, i32) {
    %c0_i32 = arith.constant 0 : i32
    %c0_i32_0 = arith.constant 0 : i32
    %c0_i32_1 = arith.constant 0 : i32
    return %c0_i32, %c0_i32_0 : i32, i32
  }
  func.func @transform_3(%arg0: i32) -> (i32, i32) {
    %c0_i32 = arith.constant 0 : i32
    %c0_i32_0 = arith.constant 0 : i32
    %c0_i32_1 = arith.constant 0 : i32
    return %c0_i32, %c0_i32_0 : i32, i32
  }
  func.func @transform_4(%arg0: i32) -> (i32, i32) {
    %c0_i32 = arith.constant 0 : i32
    %c0_i32_0 = arith.constant 0 : i32
    %c0_i32_1 = arith.constant 0 : i32
    return %c0_i32, %c0_i32_0 : i32, i32
  }
  func.func @transform_5(%arg0: i32) -> (i32, i32) {
    %c0_i32 = arith.constant 0 : i32
    %c0_i32_0 = arith.constant 0 : i32
    %c0_i32_1 = arith.constant 0 : i32
    return %c0_i32, %c0_i32_0 : i32, i32
  }
  func.func @transform_6(%arg0: i32) -> (i32, i32) {
    %c0_i32 = arith.constant 0 : i32
    %c0_i32_0 = arith.constant 0 : i32
    %c0_i32_1 = arith.constant 0 : i32
    return %c0_i32, %c0_i32_0 : i32, i32
  }
  func.func @transform_7(%arg0: i32) -> (i32, i32) {
    %c0_i32 = arith.constant 0 : i32
    %c0_i32_0 = arith.constant 0 : i32
    %c0_i32_1 = arith.constant 0 : i32
    return %c0_i32, %c0_i32_0 : i32, i32
  }
  func.func @transform_8(%arg0: i32) -> (i32, i32) {
    %c0_i32 = arith.constant 0 : i32
    %c0_i32_0 = arith.constant 0 : i32
    %c0_i32_1 = arith.constant 0 : i32
    return %c0_i32, %c0_i32_0 : i32, i32
  }
  func.func @transform_9(%arg0: i32) -> (i32, i32) {
    %c0_i32 = arith.constant 0 : i32
    %c0_i32_0 = arith.constant 0 : i32
    return %c0_i32, %arg0 : i32, i32
  }
}

</mosaic_0001>

<llo_original>
// kernel: tpu_custom_call.1
$region0: #{tpu_custom_call.1}
  #allocation0 [shape = 'u32[]', space=smem, size = 0x4, offset = 0x4, fixed_abs, tag = 'smem constant byte address 0x4 - core index']
  #allocation1 [shape = 'u32[144,128]{1,0:T(1,128)}', space=vmem, size = 0x12000, scoped, tag = 'internal scratch']
  #allocation2 [shape = 'f32[1,1]{1,0:T(1,128)S(1)}', space=vmem, size = 0x200, scoped, tag = 'scoped memory for tpu_custom_call.1']
  %s0 = inlined_call_operand.hbm [shape: f32[8,512], index: 0, kind: input, shape index: {}]
  %s1 = inlined_call_operand.vmem [shape: f32[6,8], index: 1, kind: input, shape index: {}]
  %s2 = inlined_call_operand.vmem [shape: f32[6,1], index: 2, kind: input, shape index: {}]
  %s3 = inlined_call_operand.vmem [shape: f32[4,6], index: 3, kind: input, shape index: {}]
  %s4 = inlined_call_operand.vmem [shape: f32[4,1], index: 4, kind: input, shape index: {}]
  %s5 = inlined_call_operand.vmem [shape: f32[2,4], index: 5, kind: input, shape index: {}]
  %s6 = inlined_call_operand.vmem [shape: f32[2,1], index: 6, kind: input, shape index: {}]
  %s7 = inlined_call_operand.vmem [shape: f32[1,2], index: 7, kind: input, shape index: {}]
  %s8 = inlined_call_operand.<no memory space> [shape: f32[1,1], index: 8, kind: input, shape index: {}]
  %s9 = inlined_call_operand.hbm [shape: f32[1,512], index: 9, kind: output, shape index: {}]
  %s10 = sld [smem:[#allocation0]]
  $region73: #{tpu_custom_call.1} parent=0
    _
  %s12 = ssub.s32 1, %s10
  %s13 = scalar_select 0, %s12, %s10
  %v14 = vstv %s8
  %15 = vst [vmem:[#allocation2] sm:$0x1] %v14
  $region1: #{tpu_custom_call.1} parent=0
    #allocation3 [shape = 'u8[16384]{0}', space=vmem, size = 0x4000, scoped, tag = 'input window, operand 0']
    #allocation4 [shape = 's32[2]{0}', space=sflag, size = 0x8, scoped, tag = 'scoped memory for tpu_custom_call.1']
    #allocation5 [shape = 's32[2]{0}', space=sflag, size = 0x8, scoped, tag = 'scoped memory for tpu_custom_call.1']
    #allocation6 [shape = 'u8[2048]{0}', space=vmem, size = 0x800, scoped, tag = 'output window, operand 0']
    %16 = vsyncpa [#allocation4], 0
    %s17 = scalar_lea.sflag [#allocation4], 1
    %18 = vsyncpa %s17, 0
    %19 = vsyncpa [#allocation5], 0
    %s20 = scalar_lea.sflag [#allocation5], 1
    %21 = vsyncpa %s20, 0
    loop: start=0, step=1, limit=4
    $region2: #{tpu_custom_call.1} parent=1 // loop_pre_header
      _
    $region3: #{tpu_custom_call.1} parent=1 // loop_header
      %s23 = sphi 0, %s27
      %p24 = scmp.ge.s32.totalorder %s23, 4
      %s33 = sphi 0, %s35
      %s36 = sphi 0, %s33
      %s37 = sphi 0, %s36
      %s53 = sphi 0, %s37
      %s57 = sphi 0, %s57
      %s59 = sphi 0, %s57
      %s60 = sphi 0, %s59
      %s74 = sphi 0, %s60
      %s78 = sphi 0, %s78
      %s80 = sphi 0, %s78
      %s81 = sphi 0, %s80
      %s95 = sphi 0, %s81
      %s99 = sphi 0, %s99
      %s101 = sphi 0, %s99
      %s102 = sphi 0, %s101
      %s116 = sphi 0, %s102
      %s120 = sphi 0, %s120
      %s122 = sphi 0, %s120
      %s123 = sphi 0, %s122
      %s137 = sphi 0, %s123
      %s141 = sphi 0, %s141
      %s143 = sphi 0, %s141
      %s144 = sphi 0, %s143
      %s158 = sphi 0, %s144
      %s162 = sphi 0, %s162
      %s164 = sphi 0, %s162
      %s165 = sphi 0, %s164
      %s179 = sphi 0, %s165
      %s183 = sphi 0, %s183
      %s185 = sphi 0, %s183
      %s186 = sphi 0, %s185
      %s200 = sphi 0, %s186
      %s204 = sphi 0, %s204
      %s206 = sphi 0, %s204
      %s207 = sphi 0, %s206
      %s221 = sphi 0, %s207
      %s227 = sphi 0, %s229
      %s230 = sphi 0, %s227
      %s231 = sphi 0, %s230
      %s247 = sphi 0, %s231
    $region4: #{tpu_custom_call.1} parent=1 // loop_header_branch
      %26 = sbr.rel (%p24) target = $region8
    $region5: #{tpu_custom_call.1} parent=1 // loop_body
      %s28 = ssub.s32 %s23, 1
      %s29 = ssub.s32 %s23, 2
      %s30 = sadd.s32 %s23, 1
      %s31 = ssub.s32 %s23, %s30
      %p32 = scmp.eq.s32.totalorder %s31, 0
      %s34 = sadd.s32 %s33, 1
      %s35 = scalar_select %p32, %s33, %s34
      %p38 = pneg %p32
      %p39 = scmp.eq.s32.totalorder %s23, 1
      %p40 = por %p38, %p39
      %p41 = scmp.ne.s32.totalorder %s33, %s36
      %p42 = scmp.eq.s32.totalorder %s23, 0
      %p43 = por %p41, %p42
      %p44 = scmp.ne.s32.totalorder %s33, %s36
      %p45 = scmp.eq.s32.totalorder %s28, 1
      %p46 = por %p44, %p45
      %p47 = scmp.ne.s32.totalorder %s36, %s37
      %p48 = scmp.eq.s32.totalorder %s28, 0
      %p49 = por %p47, %p48
      %p50 = scmp.ne.s32.totalorder %s36, %s37
      %p51 = scmp.eq.s32.totalorder %s29, 1
      %p52 = por %p50, %p51
      %p54 = scmp.ne.s32.totalorder %s37, %s53
      %p55 = scmp.eq.s32.totalorder %s29, 0
      %p56 = por %p54, %p55
      %s58 = sadd.s32 %s57, 1
      %p61 = scmp.eq.s32.totalorder %s23, 1
      %p62 = scmp.ne.s32.totalorder %s57, %s59
      %p63 = scmp.eq.s32.totalorder %s23, 0
      %p64 = por %p62, %p63
      %p65 = scmp.ne.s32.totalorder %s57, %s59
      %p66 = scmp.eq.s32.totalorder %s28, 1
      %p67 = por %p65, %p66
      %p68 = scmp.ne.s32.totalorder %s59, %s60
      %p69 = scmp.eq.s32.totalorder %s28, 0
      %p70 = por %p68, %p69
      %p71 = scmp.ne.s32.totalorder %s59, %s60
      %p72 = scmp.eq.s32.totalorder %s29, 1
      %p73 = por %p71, %p72
      %p75 = scmp.ne.s32.totalorder %s60, %s74
      %p76 = scmp.eq.s32.totalorder %s29, 0
      %p77 = por %p75, %p76
      %s79 = sadd.s32 %s78, 1
      %p82 = scmp.eq.s32.totalorder %s23, 1
      %p83 = scmp.ne.s32.totalorder %s78, %s80
      %p84 = scmp.eq.s32.totalorder %s23, 0
      %p85 = por %p83, %p84
      %p86 = scmp.ne.s32.totalorder %s78, %s80
      %p87 = scmp.eq.s32.totalorder %s28, 1
      %p88 = por %p86, %p87
      %p89 = scmp.ne.s32.totalorder %s80, %s81
      %p90 = scmp.eq.s32.totalorder %s28, 0
      %p91 = por %p89, %p90
      %p92 = scmp.ne.s32.totalorder %s80, %s81
      %p93 = scmp.eq.s32.totalorder %s29, 1
      %p94 = por %p92, %p93
      %p96 = scmp.ne.s32.totalorder %s81, %s95
      %p97 = scmp.eq.s32.totalorder %s29, 0
      %p98 = por %p96, %p97
      %s100 = sadd.s32 %s99, 1
      %p103 = scmp.eq.s32.totalorder %s23, 1
      %p104 = scmp.ne.s32.totalorder %s99, %s101
      %p105 = scmp.eq.s32.totalorder %s23, 0
      %p106 = por %p104, %p105
      %p107 = scmp.ne.s32.totalorder %s99, %s101
      %p108 = scmp.eq.s32.totalorder %s28, 1
      %p109 = por %p107, %p108
      %p110 = scmp.ne.s32.totalorder %s101, %s102
      %p111 = scmp.eq.s32.totalorder %s28, 0
      %p112 = por %p110, %p111
      %p113 = scmp.ne.s32.totalorder %s101, %s102
      %p114 = scmp.eq.s32.totalorder %s29, 1
      %p115 = por %p113, %p114
      %p117 = scmp.ne.s32.totalorder %s102, %s116
      %p118 = scmp.eq.s32.totalorder %s29, 0
      %p119 = por %p117, %p118
      %s121 = sadd.s32 %s120, 1
      %p124 = scmp.eq.s32.totalorder %s23, 1
      %p125 = scmp.ne.s32.totalorder %s120, %s122
      %p126 = scmp.eq.s32.totalorder %s23, 0
      %p127 = por %p125, %p126
      %p128 = scmp.ne.s32.totalorder %s120, %s122
      %p129 = scmp.eq.s32.totalorder %s28, 1
      %p130 = por %p128, %p129
      %p131 = scmp.ne.s32.totalorder %s122, %s123
      %p132 = scmp.eq.s32.totalorder %s28, 0
      %p133 = por %p131, %p132
      %p134 = scmp.ne.s32.totalorder %s122, %s123
      %p135 = scmp.eq.s32.totalorder %s29, 1
      %p136 = por %p134, %p135
      %p138 = scmp.ne.s32.totalorder %s123, %s137
      %p139 = scmp.eq.s32.totalorder %s29, 0
      %p140 = por %p138, %p139
      %s142 = sadd.s32 %s141, 1
      %p145 = scmp.eq.s32.totalorder %s23, 1
      %p146 = scmp.ne.s32.totalorder %s141, %s143
      %p147 = scmp.eq.s32.totalorder %s23, 0
      %p148 = por %p146, %p147
      %p149 = scmp.ne.s32.totalorder %s141, %s143
      %p150 = scmp.eq.s32.totalorder %s28, 1
      %p151 = por %p149, %p150
      %p152 = scmp.ne.s32.totalorder %s143, %s144
      %p153 = scmp.eq.s32.totalorder %s28, 0
      %p154 = por %p152, %p153
      %p155 = scmp.ne.s32.totalorder %s143, %s144
      %p156 = scmp.eq.s32.totalorder %s29, 1
      %p157 = por %p155, %p156
      %p159 = scmp.ne.s32.totalorder %s144, %s158
      %p160 = scmp.eq.s32.totalorder %s29, 0
      %p161 = por %p159, %p160
      %s163 = sadd.s32 %s162, 1
      %p166 = scmp.eq.s32.totalorder %s23, 1
      %p167 = scmp.ne.s32.totalorder %s162, %s164
      %p168 = scmp.eq.s32.totalorder %s23, 0
      %p169 = por %p167, %p168
      %p170 = scmp.ne.s32.totalorder %s162, %s164
      %p171 = scmp.eq.s32.totalorder %s28, 1
      %p172 = por %p170, %p171
      %p173 = scmp.ne.s32.totalorder %s164, %s165
      %p174 = scmp.eq.s32.totalorder %s28, 0
      %p175 = por %p173, %p174
      %p176 = scmp.ne.s32.totalorder %s164, %s165
      %p177 = scmp.eq.s32.totalorder %s29, 1
      %p178 = por %p176, %p177
      %p180 = scmp.ne.s32.totalorder %s165, %s179
      %p181 = scmp.eq.s32.totalorder %s29, 0
      %p182 = por %p180, %p181
      %s184 = sadd.s32 %s183, 1
      %p187 = scmp.eq.s32.totalorder %s23, 1
      %p188 = scmp.ne.s32.totalorder %s183, %s185
      %p189 = scmp.eq.s32.totalorder %s23, 0
      %p190 = por %p188, %p189
      %p191 = scmp.ne.s32.totalorder %s183, %s185
      %p192 = scmp.eq.s32.totalorder %s28, 1
      %p193 = por %p191, %p192
      %p194 = scmp.ne.s32.totalorder %s185, %s186
      %p195 = scmp.eq.s32.totalorder %s28, 0
      %p196 = por %p194, %p195
      %p197 = scmp.ne.s32.totalorder %s185, %s186
      %p198 = scmp.eq.s32.totalorder %s29, 1
      %p199 = por %p197, %p198
      %p201 = scmp.ne.s32.totalorder %s186, %s200
      %p202 = scmp.eq.s32.totalorder %s29, 0
      %p203 = por %p201, %p202
      %s205 = sadd.s32 %s204, 1
      %p208 = scmp.eq.s32.totalorder %s23, 1
      %p209 = scmp.ne.s32.totalorder %s204, %s206
      %p210 = scmp.eq.s32.totalorder %s23, 0
      %p211 = por %p209, %p210
      %p212 = scmp.ne.s32.totalorder %s204, %s206
      %p213 = scmp.eq.s32.totalorder %s28, 1
      %p214 = por %p212, %p213
      %p215 = scmp.ne.s32.totalorder %s206, %s207
      %p216 = scmp.eq.s32.totalorder %s28, 0
      %p217 = por %p215, %p216
      %p218 = scmp.ne.s32.totalorder %s206, %s207
      %p219 = scmp.eq.s32.totalorder %s29, 1
      %p220 = por %p218, %p219
      %p222 = scmp.ne.s32.totalorder %s207, %s221
      %p223 = scmp.eq.s32.totalorder %s29, 0
      %p224 = por %p222, %p223
      %s225 = ssub.s32 %s23, %s30
      %p226 = scmp.eq.s32.totalorder %s225, 0
      %s228 = sadd.s32 %s227, 1
      %s229 = scalar_select %p226, %s227, %s228
      %p232 = pneg %p226
      %p233 = scmp.eq.s32.totalorder %s23, 1
      %p234 = por %p232, %p233
      %p235 = scmp.ne.s32.totalorder %s227, %s230
      %p236 = scmp.eq.s32.totalorder %s23, 0
      %p237 = por %p235, %p236
      %p238 = scmp.ne.s32.totalorder %s227, %s230
      %p239 = scmp.eq.s32.totalorder %s28, 1
      %p240 = por %p238, %p239
      %p241 = scmp.ne.s32.totalorder %s230, %s231
      %p242 = scmp.eq.s32.totalorder %s28, 0
      %p243 = por %p241, %p242
      %p244 = scmp.ne.s32.totalorder %s230, %s231
      %p245 = scmp.eq.s32.totalorder %s29, 1
      %p246 = por %p244, %p245
      %p248 = scmp.ne.s32.totalorder %s231, %s247
      %p249 = scmp.eq.s32.totalorder %s29, 0
      %p250 = por %p248, %p249
      %p251 = scmp.le.s32.totalorder 1, %s23
      %p252 = scmp.lt.s32.totalorder %s23, 3
      %p253 = pnand %p251, %p252
      %p254 = pneg %p253
      // Predicated region
      $region9: #{tpu_custom_call.1} parent=5 // pred_check
        _
      $region10: #{tpu_custom_call.1} parent=5 // pred_check_branch
        %256 = sbr.rel (%p253) target = $region12
      $region11: #{tpu_custom_call.1} parent=5 // pred_region
        %s257 = ssub.s32 %s23, 1
        // Predicated region
        $region13: #{tpu_custom_call.1} parent=11 // pred_check
          %p258 = pneg %p70
        $region14: #{tpu_custom_call.1} parent=11 // pred_check_branch
          %260 = sbr.rel (%p258) target = $region16
        $region15: #{tpu_custom_call.1} parent=11 // pred_region
          _
        $region16: #{tpu_custom_call.1} parent=11 // pred_fallthru
          _
        // Predicated region
        $region17: #{tpu_custom_call.1} parent=11 // pred_check
          %p261 = pneg %p91
        $region18: #{tpu_custom_call.1} parent=11 // pred_check_branch
          %263 = sbr.rel (%p261) target = $region20
        $region19: #{tpu_custom_call.1} parent=11 // pred_region
          _
        $region20: #{tpu_custom_call.1} parent=11 // pred_fallthru
          _
        // Predicated region
        $region21: #{tpu_custom_call.1} parent=11 // pred_check
          %p264 = pneg %p112
        $region22: #{tpu_custom_call.1} parent=11 // pred_check_branch
          %266 = sbr.rel (%p264) target = $region24
        $region23: #{tpu_custom_call.1} parent=11 // pred_region
          _
        $region24: #{tpu_custom_call.1} parent=11 // pred_fallthru
          _
        // Predicated region
        $region25: #{tpu_custom_call.1} parent=11 // pred_check
          %p267 = pneg %p133
        $region26: #{tpu_custom_call.1} parent=11 // pred_check_branch
          %269 = sbr.rel (%p267) target = $region28
        $region27: #{tpu_custom_call.1} parent=11 // pred_region
          _
        $region28: #{tpu_custom_call.1} parent=11 // pred_fallthru
          _
        // Predicated region
        $region29: #{tpu_custom_call.1} parent=11 // pred_check
          %p270 = pneg %p154
        $region30: #{tpu_custom_call.1} parent=11 // pred_check_branch
          %272 = sbr.rel (%p270) target = $region32
        $region31: #{tpu_custom_call.1} parent=11 // pred_region
          _
        $region32: #{tpu_custom_call.1} parent=11 // pred_fallthru
          _
        // Predicated region
        $region33: #{tpu_custom_call.1} parent=11 // pred_check
          %p273 = pneg %p175
        $region34: #{tpu_custom_call.1} parent=11 // pred_check_branch
          %275 = sbr.rel (%p273) target = $region36
        $region35: #{tpu_custom_call.1} parent=11 // pred_region
          _
        $region36: #{tpu_custom_call.1} parent=11 // pred_fallthru
          _
        // Predicated region
        $region37: #{tpu_custom_call.1} parent=11 // pred_check
          %p276 = pneg %p196
        $region38: #{tpu_custom_call.1} parent=11 // pred_check_branch
          %278 = sbr.rel (%p276) target = $region40
        $region39: #{tpu_custom_call.1} parent=11 // pred_region
          _
        $region40: #{tpu_custom_call.1} parent=11 // pred_fallthru
          _
        // Predicated region
        $region41: #{tpu_custom_call.1} parent=11 // pred_check
          %p279 = pneg %p217
        $region42: #{tpu_custom_call.1} parent=11 // pred_check_branch
          %281 = sbr.rel (%p279) target = $region44
        $region43: #{tpu_custom_call.1} parent=11 // pred_region
          _
        $region44: #{tpu_custom_call.1} parent=11 // pred_fallthru
          _
      $region12: #{tpu_custom_call.1} parent=5 // pred_fallthru
        _
      %p282 = scmp.lt.s32.totalorder %s23, 2
      // Predicated region
      $region45: #{tpu_custom_call.1} parent=5 // pred_check
        %p283 = pneg %p282
      $region46: #{tpu_custom_call.1} parent=5 // pred_check_branch
        %285 = sbr.rel (%p283) target = $region48
      $region47: #{tpu_custom_call.1} parent=5 // pred_region
        // Predicated region
        $region49: #{tpu_custom_call.1} parent=47 // pred_check
          %p286 = pneg %p43
        $region50: #{tpu_custom_call.1} parent=47 // pred_check_branch
          %288 = sbr.rel (%p286) target = $region52
        $region51: #{tpu_custom_call.1} parent=47 // pred_region
          %s289 = sand.u32 %s33, 1
          %s290 = scalar_lea.sflag [#allocation4], %s289
          %s291 = sand.u32 %s33, 1
          %s292 = smul.addr %s291, 16
          %s293 = scalar_lea.vmem [#allocation3], %s292
          %s294 = smul.u32 2, %s23
          %s296 = ssub.s32 256, 256
          %297 = vsyncadd %s290, %s296
          %s298 = smul.addr %s294, 128
          %s299 = scalar_lea.hbm %s0, %s298
          %s301 = sshll.u32 %s293, 4
          %s302 = int_to_ptr.vmem [resolvable:$true] %s301
          %304 = dma.hbm_to_vmem [thread:$0]  %s299, 256, %s302, %s290
        $region52: #{tpu_custom_call.1} parent=47 // pred_fallthru
          _
      $region48: #{tpu_custom_call.1} parent=5 // pred_fallthru
        _
      %p305 = scmp.le.s32.totalorder 1, %s23
      %p306 = scmp.lt.s32.totalorder %s23, 3
      %p307 = pnand %p305, %p306
      %p308 = pneg %p307
      // Predicated region
      $region53: #{tpu_custom_call.1} parent=5 // pred_check
        _
      $region54: #{tpu_custom_call.1} parent=5 // pred_check_branch
        %310 = sbr.rel (%p307) target = $region56
      $region55: #{tpu_custom_call.1} parent=5 // pred_region
        %s311 = ssub.s32 %s23, 1
        %s312 = sand.u32 %s36, 1
        %s313 = scalar_lea.sflag [#allocation4], %s312
        %s314 = sand.u32 %s36, 1
        %s315 = smul.addr %s314, 16
        %s316 = scalar_lea.vmem [#allocation3], %s315
        // Predicated region
        $region57: #{tpu_custom_call.1} parent=55 // pred_check
          %p317 = pneg %p49
        $region58: #{tpu_custom_call.1} parent=55 // pred_check_branch
          %319 = sbr.rel (%p317) target = $region60
        $region59: #{tpu_custom_call.1} parent=55 // pred_region
          %320 = dma.done %s313, 256
        $region60: #{tpu_custom_call.1} parent=55 // pred_fallthru
          _
        %s321 = sand.u32 %s36, 1
        %s322 = scalar_lea.sflag [#allocation4], %s321
        %s323 = sand.u32 %s36, 1
        %s324 = smul.addr %s323, 16
        %s325 = scalar_lea.vmem [#allocation3], %s324
        %p326 = pneg %p49
        %p327 = pneg %p46
        %p328 = pneg %p70
        %p329 = pneg %p67
        %p330 = pneg %p91
        %p331 = pneg %p88
        %p332 = pneg %p112
        %p333 = pneg %p109
        %p334 = pneg %p133
        %p335 = pneg %p130
        %p336 = pneg %p154
        %p337 = pneg %p151
        %p338 = pneg %p175
        %p339 = pneg %p172
        %p340 = pneg %p196
        %p341 = pneg %p193
        %p342 = pneg %p217
        %p343 = pneg %p214
        %p344 = pneg %p243
        %p345 = pneg %p240
        %s346 = sand.u32 %s230, 1
        %s347 = scalar_lea.sflag [#allocation5], %s346
        %s348 = sand.u32 %s230, 1
        %s349 = smul.addr %s348, 2
        %s350 = scalar_lea.vmem [#allocation6], %s349
        %s351 = smul.u32 2, %s28
        %s352 = smul.u32 2, %s28
        %v353 = vld [vmem:[%s316] sm:$0xff]
        %v354 = vld [vmem:[%s316 + $0x8] sm:$0xff]
        %v355 = vld [vmem:[%s1] sm:$0x3f]
        %v356 = vld [vmem:[%s2] sm:$0x3f]
        %358 = vset.pattern.permute.xlu0 0
        %359 = vperm.xlu0 %358, %v356
        %v360 = vpop.permute.xlu0 %359
        %vm362 = vcmask 64512
        %v364 = vsel %vm362, %v355, 0
        %366 = vmatprep.subr.mxu0 %v354
        %367 = vmatpush1.msra.mxu0 %v353
        %368 = vmatprep.subr.mxu0 0.0
        %369 = vmatpush1.msra.mxu0 0.0
        %370 = vmatprep.subr.mxu0 0.0
        %371 = vmatpush1.msra.mxu0 0.0
        %372 = vmatprep.subr.mxu0 0.0
        %373 = vmatpush1.msra.mxu0 0.0
        %374 = vmatprep.subr.mxu0 0.0
        %375 = vmatpush1.msra.mxu0 0.0
        %376 = vmatprep.subr.mxu0 0.0
        %377 = vmatpush1.msra.mxu0 0.0
        %378 = vmatprep.subr.mxu0 0.0
        %379 = vmatpush1.msra.mxu0 0.0
        %380 = vmatprep.subr.mxu0 0.0
        %381 = vmatpush1.msra.mxu0 0.0
        %382 = vmatprep.subr.mxu0 0.0
        %383 = vmatpush1.msra.mxu0 0.0
        %384 = vmatprep.subr.mxu0 0.0
        %385 = vmatpush1.msra.mxu0 0.0
        %386 = vmatprep.subr.mxu0 0.0
        %387 = vmatpush1.msra.mxu0 0.0
        %388 = vmatprep.subr.mxu0 0.0
        %389 = vmatpush1.msra.mxu0 0.0
        %390 = vmatprep.subr.mxu0 0.0
        %391 = vmatpush1.msra.mxu0 0.0
        %392 = vmatprep.subr.mxu0 0.0
        %393 = vmatpush1.msra.mxu0 0.0
        %394 = vmatprep.subr.mxu0 0.0
        %395 = vmatpush1.msra.mxu0 0.0
        %396 = vmatprep.subr.mxu0 0.0
        %397 = vmatpush1.msra.mxu0 0.0
        %398 = vmatprep.subr.mxu0 0.0
        %399 = vmatpush1.msra.mxu0 0.0
        %400 = vmatprep.subr.mxu0 0.0
        %401 = vmatpush1.msra.mxu0 0.0
        %402 = vmatprep.subr.mxu0 0.0
        %403 = vmatpush1.msra.mxu0 0.0
        %404 = vmatprep.subr.mxu0 0.0
        %405 = vmatpush1.msra.mxu0 0.0
        %406 = vmatprep.subr.mxu0 0.0
        %407 = vmatpush1.msra.mxu0 0.0
        %408 = vmatprep.subr.mxu0 0.0
        %409 = vmatpush1.msra.mxu0 0.0
        %410 = vmatprep.subr.mxu0 0.0
        %411 = vmatpush1.msra.mxu0 0.0
        %412 = vmatprep.subr.mxu0 0.0
        %413 = vmatpush1.msra.mxu0 0.0
        %414 = vmatprep.subr.mxu0 0.0
        %415 = vmatpush1.msra.mxu0 0.0
        %416 = vmatprep.subr.mxu0 0.0
        %417 = vmatpush1.msra.mxu0 0.0
        %418 = vmatprep.subr.mxu0 0.0
        %419 = vmatpush1.msra.mxu0 0.0
        %420 = vmatprep.subr.mxu0 0.0
        %421 = vmatpush1.msra.mxu0 0.0
        %422 = vmatprep.subr.mxu0 0.0
        %423 = vmatpush1.msra.mxu0 0.0
        %424 = vmatprep.subr.mxu0 0.0
        %425 = vmatpush1.msra.mxu0 0.0
        %426 = vmatprep.subr.mxu0 0.0
        %427 = vmatpush1.msra.mxu0 0.0
        %428 = vmatprep.subr.mxu0 0.0
        %429 = vmatpush1.msra.mxu0 0.0
        %430 = vmatprep.mubr.f32.mxu0 0.0
        %431 = vmatmul.mubr.f32.gmra.mrb[0].mxu0 %v364
        %v432 = vpop.f32.mrb[0].mxu0
        %v433 = vadd.f32 %v360, %v432
        %v434 = vpop.f32.mrb[0].mxu0
        %v435 = vadd.f32 %v360, %v434
        %436 = vdwg.mxu0
        %vm437 = vcmp.ge.f32.partialorder %v433, 0.0
        %vm438 = vcmp.ge.f32.partialorder %v435, 0.0
        %v439 = vmul.f32 %v433, 0.01
        %v440 = vmul.f32 %v435, 0.01
        %v441 = vsel %vm437, %v433, %v439
        %v442 = vsel %vm438, %v435, %v440
        %v443 = vld [vmem:[%s3] sm:$0xf]
        %v444 = vld [vmem:[%s4] sm:$0xf]
        %446 = vset.pattern.permute.xlu0 0
        %447 = vperm.xlu0 %446, %v444
        %v448 = vpop.permute.xlu0 %447
        %vm450 = vcmask 48128
        %v452 = vsel %vm450, %v443, 0
        %vm454 = vcmask 1045504
        %v456 = vsel %vm454, %v441, 0
        %v459 = vsel %vm454, %v442, 0
        %461 = vmatprep.subr.mxu0 %v459
        %462 = vmatpush1.msra.mxu0 %v456
        %463 = vmatprep.subr.mxu0 0.0
        %464 = vmatpush1.msra.mxu0 0.0
        %465 = vmatprep.subr.mxu0 0.0
        %466 = vmatpush1.msra.mxu0 0.0
        %467 = vmatprep.subr.mxu0 0.0
        %468 = vmatpush1.msra.mxu0 0.0
        %469 = vmatprep.subr.mxu0 0.0
        %470 = vmatpush1.msra.mxu0 0.0
        %471 = vmatprep.subr.mxu0 0.0
        %472 = vmatpush1.msra.mxu0 0.0
        %473 = vmatprep.subr.mxu0 0.0
        %474 = vmatpush1.msra.mxu0 0.0
        %475 = vmatprep.subr.mxu0 0.0
        %476 = vmatpush1.msra.mxu0 0.0
        %477 = vmatprep.subr.mxu0 0.0
        %478 = vmatpush1.msra.mxu0 0.0
        %479 = vmatprep.subr.mxu0 0.0
        %480 = vmatpush1.msra.mxu0 0.0
        %481 = vmatprep.subr.mxu0 0.0
        %482 = vmatpush1.msra.mxu0 0.0
        %483 = vmatprep.subr.mxu0 0.0
        %484 = vmatpush1.msra.mxu0 0.0
        %485 = vmatprep.subr.mxu0 0.0
        %486 = vmatpush1.msra.mxu0 0.0
        %487 = vmatprep.subr.mxu0 0.0
        %488 = vmatpush1.msra.mxu0 0.0
        %489 = vmatprep.subr.mxu0 0.0
        %490 = vmatpush1.msra.mxu0 0.0
        %491 = vmatprep.subr.mxu0 0.0
        %492 = vmatpush1.msra.mxu0 0.0
        %493 = vmatprep.subr.mxu0 0.0
        %494 = vmatpush1.msra.mxu0 0.0
        %495 = vmatprep.subr.mxu0 0.0
        %496 = vmatpush1.msra.mxu0 0.0
        %497 = vmatprep.subr.mxu0 0.0
        %498 = vmatpush1.msra.mxu0 0.0
        %499 = vmatprep.subr.mxu0 0.0
        %500 = vmatpush1.msra.mxu0 0.0
        %501 = vmatprep.subr.mxu0 0.0
        %502 = vmatpush1.msra.mxu0 0.0
        %503 = vmatprep.subr.mxu0 0.0
        %504 = vmatpush1.msra.mxu0 0.0
        %505 = vmatprep.subr.mxu0 0.0
        %506 = vmatpush1.msra.mxu0 0.0
        %507 = vmatprep.subr.mxu0 0.0
        %508 = vmatpush1.msra.mxu0 0.0
        %509 = vmatprep.subr.mxu0 0.0
        %510 = vmatpush1.msra.mxu0 0.0
        %511 = vmatprep.subr.mxu0 0.0
        %512 = vmatpush1.msra.mxu0 0.0
        %513 = vmatprep.subr.mxu0 0.0
        %514 = vmatpush1.msra.mxu0 0.0
        %515 = vmatprep.subr.mxu0 0.0
        %516 = vmatpush1.msra.mxu0 0.0
        %517 = vmatprep.subr.mxu0 0.0
        %518 = vmatpush1.msra.mxu0 0.0
        %519 = vmatprep.subr.mxu0 0.0
        %520 = vmatpush1.msra.mxu0 0.0
        %521 = vmatprep.subr.mxu0 0.0
        %522 = vmatpush1.msra.mxu0 0.0
        %523 = vmatprep.subr.mxu0 0.0
        %524 = vmatpush1.msra.mxu0 0.0
        %525 = vmatprep.mubr.f32.mxu0 0.0
        %526 = vmatmul.mubr.f32.gmra.mrb[0].mxu0 %v452
        %v527 = vpop.f32.mrb[0].mxu0
        %v528 = vadd.f32 %v448, %v527
        %v529 = vpop.f32.mrb[0].mxu0
        %v530 = vadd.f32 %v448, %v529
        %531 = vdwg.mxu0
        %vm532 = vcmp.ge.f32.partialorder %v528, 0.0
        %vm533 = vcmp.ge.f32.partialorder %v530, 0.0
        %v534 = vmul.f32 %v528, 0.01
        %v535 = vmul.f32 %v530, 0.01
        %v536 = vsel %vm532, %v528, %v534
        %v537 = vsel %vm533, %v530, %v535
        %v538 = vld [vmem:[%s5] sm:$0x3]
        %v539 = vld [vmem:[%s6] sm:$0x3]
        %541 = vset.pattern.permute.xlu0 0
        %542 = vperm.xlu0 %541, %v539
        %v543 = vpop.permute.xlu0 %542
        %vm545 = vcmask 31744
        %v547 = vsel %vm545, %v538, 0
        %vm549 = vcmask 1043456
        %v551 = vsel %vm549, %v536, 0
        %v554 = vsel %vm549, %v537, 0
        %556 = vmatprep.subr.mxu0 %v554
        %557 = vmatpush1.msra.mxu0 %v551
        %558 = vmatprep.subr.mxu0 0.0
        %559 = vmatpush1.msra.mxu0 0.0
        %560 = vmatprep.subr.mxu0 0.0
        %561 = vmatpush1.msra.mxu0 0.0
        %562 = vmatprep.subr.mxu0 0.0
        %563 = vmatpush1.msra.mxu0 0.0
        %564 = vmatprep.subr.mxu0 0.0
        %565 = vmatpush1.msra.mxu0 0.0
        %566 = vmatprep.subr.mxu0 0.0
        %567 = vmatpush1.msra.mxu0 0.0
        %568 = vmatprep.subr.mxu0 0.0
        %569 = vmatpush1.msra.mxu0 0.0
        %570 = vmatprep.subr.mxu0 0.0
        %571 = vmatpush1.msra.mxu0 0.0
        %572 = vmatprep.subr.mxu0 0.0
        %573 = vmatpush1.msra.mxu0 0.0
        %574 = vmatprep.subr.mxu0 0.0
        %575 = vmatpush1.msra.mxu0 0.0
        %576 = vmatprep.subr.mxu0 0.0
        %577 = vmatpush1.msra.mxu0 0.0
        %578 = vmatprep.subr.mxu0 0.0
        %579 = vmatpush1.msra.mxu0 0.0
        %580 = vmatprep.subr.mxu0 0.0
        %581 = vmatpush1.msra.mxu0 0.0
        %582 = vmatprep.subr.mxu0 0.0
        %583 = vmatpush1.msra.mxu0 0.0
        %584 = vmatprep.subr.mxu0 0.0
        %585 = vmatpush1.msra.mxu0 0.0
        %586 = vmatprep.subr.mxu0 0.0
        %587 = vmatpush1.msra.mxu0 0.0
        %588 = vmatprep.subr.mxu0 0.0
        %589 = vmatpush1.msra.mxu0 0.0
        %590 = vmatprep.subr.mxu0 0.0
        %591 = vmatpush1.msra.mxu0 0.0
        %592 = vmatprep.subr.mxu0 0.0
        %593 = vmatpush1.msra.mxu0 0.0
        %594 = vmatprep.subr.mxu0 0.0
        %595 = vmatpush1.msra.mxu0 0.0
        %596 = vmatprep.subr.mxu0 0.0
        %597 = vmatpush1.msra.mxu0 0.0
        %598 = vmatprep.subr.mxu0 0.0
        %599 = vmatpush1.msra.mxu0 0.0
        %600 = vmatprep.subr.mxu0 0.0
        %601 = vmatpush1.msra.mxu0 0.0
        %602 = vmatprep.subr.mxu0 0.0
        %603 = vmatpush1.msra.mxu0 0.0
        %604 = vmatprep.subr.mxu0 0.0
        %605 = vmatpush1.msra.mxu0 0.0
        %606 = vmatprep.subr.mxu0 0.0
        %607 = vmatpush1.msra.mxu0 0.0
        %608 = vmatprep.subr.mxu0 0.0
        %609 = vmatpush1.msra.mxu0 0.0
        %610 = vmatprep.subr.mxu0 0.0
        %611 = vmatpush1.msra.mxu0 0.0
        %612 = vmatprep.subr.mxu0 0.0
        %613 = vmatpush1.msra.mxu0 0.0
        %614 = vmatprep.subr.mxu0 0.0
        %615 = vmatpush1.msra.mxu0 0.0
        %616 = vmatprep.subr.mxu0 0.0
        %617 = vmatpush1.msra.mxu0 0.0
        %618 = vmatprep.subr.mxu0 0.0
        %619 = vmatpush1.msra.mxu0 0.0
        %620 = vmatprep.mubr.f32.mxu0 0.0
        %621 = vmatmul.mubr.f32.gmra.mrb[0].mxu0 %v547
        %v622 = vpop.f32.mrb[0].mxu0
        %v623 = vadd.f32 %v543, %v622
        %v624 = vpop.f32.mrb[0].mxu0
        %v625 = vadd.f32 %v543, %v624
        %626 = vdwg.mxu0
        %vm627 = vcmp.ge.f32.partialorder %v623, 0.0
        %vm628 = vcmp.ge.f32.partialorder %v625, 0.0
        %v629 = vmul.f32 %v623, 0.01
        %v630 = vmul.f32 %v625, 0.01
        %v631 = vsel %vm627, %v623, %v629
        %v632 = vsel %vm628, %v625, %v630
        %v633 = vld [vmem:[%s7] sm:$0x1]
        %v634 = vld [vmem:[#allocation2] sm:$0x1]
        %636 = vset.pattern.permute.xlu0 0
        %637 = vperm.xlu0 %636, %v634
        %v638 = vpop.permute.xlu0 %637
        %v640 = vlaneseq
        %v641 = vshrl.u32 %v640, 7
        %v642 = vsub.s32 0, %v641
        %v643 = vrot.slane %v638, %v642
        %vm644 = vcmask 15360
        %v646 = vsel %vm644, %v633, 0
        %vm648 = vcmask 1041408
        %v650 = vsel %vm648, %v631, 0
        %v653 = vsel %vm648, %v632, 0
        %655 = vmatprep.subr.mxu0 %v653
        %656 = vmatpush1.msra.mxu0 %v650
        %657 = vmatprep.subr.mxu0 0.0
        %658 = vmatpush1.msra.mxu0 0.0
        %659 = vmatprep.subr.mxu0 0.0
        %660 = vmatpush1.msra.mxu0 0.0
        %661 = vmatprep.subr.mxu0 0.0
        %662 = vmatpush1.msra.mxu0 0.0
        %663 = vmatprep.subr.mxu0 0.0
        %664 = vmatpush1.msra.mxu0 0.0
        %665 = vmatprep.subr.mxu0 0.0
        %666 = vmatpush1.msra.mxu0 0.0
        %667 = vmatprep.subr.mxu0 0.0
        %668 = vmatpush1.msra.mxu0 0.0
        %669 = vmatprep.subr.mxu0 0.0
        %670 = vmatpush1.msra.mxu0 0.0
        %671 = vmatprep.subr.mxu0 0.0
        %672 = vmatpush1.msra.mxu0 0.0
        %673 = vmatprep.subr.mxu0 0.0
        %674 = vmatpush1.msra.mxu0 0.0
        %675 = vmatprep.subr.mxu0 0.0
        %676 = vmatpush1.msra.mxu0 0.0
        %677 = vmatprep.subr.mxu0 0.0
        %678 = vmatpush1.msra.mxu0 0.0
        %679 = vmatprep.subr.mxu0 0.0
        %680 = vmatpush1.msra.mxu0 0.0
        %681 = vmatprep.subr.mxu0 0.0
        %682 = vmatpush1.msra.mxu0 0.0
        %683 = vmatprep.subr.mxu0 0.0
        %684 = vmatpush1.msra.mxu0 0.0
        %685 = vmatprep.subr.mxu0 0.0
        %686 = vmatpush1.msra.mxu0 0.0
        %687 = vmatprep.subr.mxu0 0.0
        %688 = vmatpush1.msra.mxu0 0.0
        %689 = vmatprep.subr.mxu0 0.0
        %690 = vmatpush1.msra.mxu0 0.0
        %691 = vmatprep.subr.mxu0 0.0
        %692 = vmatpush1.msra.mxu0 0.0
        %693 = vmatprep.subr.mxu0 0.0
        %694 = vmatpush1.msra.mxu0 0.0
        %695 = vmatprep.subr.mxu0 0.0
        %696 = vmatpush1.msra.mxu0 0.0
        %697 = vmatprep.subr.mxu0 0.0
        %698 = vmatpush1.msra.mxu0 0.0
        %699 = vmatprep.subr.mxu0 0.0
        %700 = vmatpush1.msra.mxu0 0.0
        %701 = vmatprep.subr.mxu0 0.0
        %702 = vmatpush1.msra.mxu0 0.0
        %703 = vmatprep.subr.mxu0 0.0
        %704 = vmatpush1.msra.mxu0 0.0
        %705 = vmatprep.subr.mxu0 0.0
        %706 = vmatpush1.msra.mxu0 0.0
        %707 = vmatprep.subr.mxu0 0.0
        %708 = vmatpush1.msra.mxu0 0.0
        %709 = vmatprep.subr.mxu0 0.0
        %710 = vmatpush1.msra.mxu0 0.0
        %711 = vmatprep.subr.mxu0 0.0
        %712 = vmatpush1.msra.mxu0 0.0
        %713 = vmatprep.subr.mxu0 0.0
        %714 = vmatpush1.msra.mxu0 0.0
        %715 = vmatprep.subr.mxu0 0.0
        %716 = vmatpush1.msra.mxu0 0.0
        %717 = vmatprep.subr.mxu0 0.0
        %718 = vmatpush1.msra.mxu0 0.0
        %719 = vmatprep.mubr.f32.mxu0 0.0
        %720 = vmatmul.mubr.f32.gmra.mrb[0].mxu0 %v646
        %v721 = vpop.f32.mrb[0].mxu0
        %v722 = vadd.f32 %v643, %v721
        %v723 = vpop.f32.mrb[0].mxu0
        %v724 = vadd.f32 %v643, %v723
        %725 = vdwg.mxu0
        %v726 = vmin.f32 %v722, 20.0
        %v727 = vmin.f32 %v724, 20.0
        %vm728 = vcmp.gt.f32.partialorder %v722, 20.0
        %vm729 = vcmp.gt.f32.partialorder %v724, 20.0
        %v730 = vmul.f32 %v726, 1.442695
        %v731 = vpow.pop %v730
        %v732 = vmul.f32 %v727, 1.442695
        %v733 = vpow.pop %v732
        %v734 = vadd.f32 %v731, 1.0
        %v735 = vlog2.pop %v734
        %v736 = vmul.f32 %v735, 0.6931472
        %v737 = vmul.f32 -0.5, %v731
        %v738 = vadd.f32 %v737, 1.0
        %v739 = vmul.f32 %v738, %v731
        %v740 = vand.u32 2147483647, %v731
        %vm741 = vcmp.lt.f32.partialorder %v740, 0.0004427343
        %v742 = vsel %vm741, %v739, %v736
        %v743 = vadd.f32 %v733, 1.0
        %v744 = vlog2.pop %v743
        %v745 = vmul.f32 %v744, 0.6931472
        %v746 = vmul.f32 -0.5, %v733
        %v747 = vadd.f32 %v746, 1.0
        %v748 = vmul.f32 %v747, %v733
        %v749 = vand.u32 2147483647, %v733
        %vm750 = vcmp.lt.f32.partialorder %v749, 0.0004427343
        %v751 = vsel %vm750, %v748, %v745
        %v752 = vsel %vm728, %v722, %v742
        %v753 = vsel %vm729, %v724, %v751
        %v756 = vcombine.low %v752, %v753
        %v758 = vunpack.c.l.s4 1966171168
        %v759 = vunpack.c.0.s8 %v758
        %v760 = vlaneseq
        %v761 = vshrl.u32 %v760, 7
        %v762 = vsub.s32 %v759, %v761
        %v763 = vrot.slane %v756, %v762
        %v765 = vunpack.c.l.s4 1966171168
        %v766 = vunpack.c.0.s8 %v765
        %v767 = vlaneseq
        %v768 = vshrl.u32 %v767, 7
        %v769 = vsub.s32 %v766, %v768
        %v770 = vrot.slane %v763, %v769
        %v772 = vlaneseq
        %vm773 = vcmp.ge.s32.totalorder %v772, 0
        %vm774 = vcmp.lt.s32.totalorder %v772, 256
        %vm775 = vmand %vm773, %vm774
        %776 = vst.msk [vmem:[%s350] sm:$0x3] %vm775, %v770
        %s777 = sand.u32 %s230, 1
        %s778 = scalar_lea.sflag [#allocation5], %s777
        %s779 = sand.u32 %s230, 1
        %s780 = smul.addr %s779, 2
        %s781 = scalar_lea.vmem [#allocation6], %s780
        // Predicated region
        $region61: #{tpu_custom_call.1} parent=55 // pred_check
          %p782 = pneg %p240
        $region62: #{tpu_custom_call.1} parent=55 // pred_check_branch
          %784 = sbr.rel (%p782) target = $region64
        $region63: #{tpu_custom_call.1} parent=55 // pred_region
          %s785 = smul.u32 2, %s28
          %s787 = ssub.s32 32, 32
          %788 = vsyncadd %s778, %s787
          %s789 = smul.addr %s785, 16
          %s790 = scalar_lea.hbm %s9, %s789
          %s792 = sshll.u32 %s781, 4
          %s793 = int_to_ptr.vmem [resolvable:$true] %s792
          %795 = dma.vmem_to_hbm [thread:$0]  %s793, 32, %s790, %s778
        $region64: #{tpu_custom_call.1} parent=55 // pred_fallthru
          _
      $region56: #{tpu_custom_call.1} parent=5 // pred_fallthru
        _
      %p796 = scmp.le.s32.totalorder 2, %s23
      // Predicated region
      $region65: #{tpu_custom_call.1} parent=5 // pred_check
        %p797 = pneg %p796
      $region66: #{tpu_custom_call.1} parent=5 // pred_check_branch
        %799 = sbr.rel (%p797) target = $region68
      $region67: #{tpu_custom_call.1} parent=5 // pred_region
        %s800 = ssub.s32 %s23, 2
        // Predicated region
        $region69: #{tpu_custom_call.1} parent=67 // pred_check
          %p801 = pneg %p246
        $region70: #{tpu_custom_call.1} parent=67 // pred_check_branch
          %803 = sbr.rel (%p801) target = $region72
        $region71: #{tpu_custom_call.1} parent=67 // pred_region
          %s804 = sand.u32 %s231, 1
          %s805 = scalar_lea.sflag [#allocation5], %s804
          %s806 = sand.u32 %s231, 1
          %s807 = smul.addr %s806, 2
          %s808 = scalar_lea.vmem [#allocation6], %s807
          %809 = dma.done %s805, 32
        $region72: #{tpu_custom_call.1} parent=67 // pred_fallthru
          _
      $region68: #{tpu_custom_call.1} parent=5 // pred_fallthru
        _
    $region6: #{tpu_custom_call.1} parent=1 // loop_footer
      %s27 = sadd.s32 1, %s23
    $region7: #{tpu_custom_call.1} parent=1 // loop_footer_branch
      %22 = sbr.rel target = $region3
    $region8: #{tpu_custom_call.1} parent=1 // loop_exit
      _
    %810 = vsyncpa [#allocation4], 1
    %s811 = scalar_lea.sflag [#allocation4], 1
    %812 = vsyncpa %s811, 1
    %813 = vsyncpa [#allocation5], 1
    %s814 = scalar_lea.sflag [#allocation5], 1
    %815 = vsyncpa %s814, 1

</llo_original>
